<compile_context>
chip_gen: v5e
topology: v5e:2x2
jax: 0.10.0
libtpu: 0.0.40
codegen_flags: <defaults>
</compile_context>

<pallas_src>
import jax
import jax.numpy as jnp
from jax.experimental import pallas as pl
from jax.experimental.pallas import tpu as pltpu


def fused_linear_kernel(x_ref, wt_ref, b_ref, o_ref):
    # v2 = x @ W^T + b ; v3 = 0.5 * v2 ; v4 = v3 + 1/sqrt(2)
    # wt_ref is the pre-transposed weight (K, N): standard (1,0) contraction,
    # MXU consumes it directly, nothing is transposed in-kernel.
    acc = jnp.dot(x_ref[...], wt_ref[...], preferred_element_type=jnp.float32)
    acc = acc + b_ref[...]                          # (B, N) + (1, N) broadcast
    o_ref[...] = (0.5 * acc + 0.7071067811865476).astype(o_ref.dtype)


def prepare_params(weight, bias):
    """One-time parameter prep (outside the per-call path).

    weight: (N, K) = (256, 128) PyTorch nn.Linear layout
    bias  : (N,)   = (256,)
    Returns (weight_t (K, N), bias_2d (1, N)) ready for the kernel.
    """
    weight_t = jnp.asarray(weight).T               # (128, 256), materialized once
    bias_2d = jnp.asarray(bias).reshape(1, -1)     # (1, 256), materialized once
    return weight_t, bias_2d


def model_forward(x, weight_t, bias_2d):
    """x: (B, 128) f32, weight_t: (128, 256) f32, bias_2d: (1, 256) f32 -> (B, 256) f32."""
    B, K = x.shape
    N = weight_t.shape[1]

    flops = 2 * B * K * N
    bytes_accessed = (B * K + K * N + N + B * N) * 4

    return pl.pallas_call(
        fused_linear_kernel,
        out_shape=jax.ShapeDtypeStruct((B, N), jnp.float32),
        # Grid-less call: whole operands resident in VMEM; no double-buffered
        # windows for single-use inputs, no grid loop overhead.
        in_specs=[
            pl.BlockSpec(memory_space=pltpu.MemorySpace.VMEM),
            pl.BlockSpec(memory_space=pltpu.MemorySpace.VMEM),
            pl.BlockSpec(memory_space=pltpu.MemorySpace.VMEM),
        ],
        out_specs=pl.BlockSpec(memory_space=pltpu.MemorySpace.VMEM),
        cost_estimate=pl.CostEstimate(
            flops=flops, bytes_accessed=bytes_accessed, transcendentals=0),
    )(x, weight_t, bias_2d)


if __name__ == "__main__":
    key = jax.random.PRNGKey(0)
    kx, kw, kb = jax.random.split(key, 3)

    # Deterministic synthetic parameters matching nn.Linear(128, 256, bias=True)
    x1 = jax.random.normal(kx, (2, 128), dtype=jnp.float32)
    bound = 1.0 / jnp.sqrt(128.0)
    weight = jax.random.uniform(kw, (256, 128), minval=-bound, maxval=bound,
                                dtype=jnp.float32)
    bias = jax.random.uniform(kb, (256,), minval=-bound, maxval=bound,
                              dtype=jnp.float32)

    # One-time prep (not in the per-call path): transpose weight, 2-D bias.
    weight_t, bias_2d = prepare_params(weight, bias)
    jax.block_until_ready((weight_t, bias_2d))

    out = model_forward(x1, weight_t, bias_2d)
    jax.block_until_ready(out)

    # Reference check in plain JAX against the original (N, K) layout.
    ref = 0.5 * (x1 @ weight.T + bias) + 0.7071067811865476
    assert out.shape == (2, 256)
    assert jnp.allclose(out, ref, atol=1e-5, rtol=1e-5)

    print("KERNEL_OK")
</pallas_src>

<mosaic_0001>
module attributes {stable_mosaic.version = 11 : i64} {
  func.func @fused_linear_kernel(%arg0: memref<2x128xf32, #tpu.memory_space<vmem>>, %arg1: memref<128x256xf32, #tpu.memory_space<vmem>>, %arg2: memref<1x256xf32, #tpu.memory_space<vmem>>, %arg3: memref<2x256xf32, #tpu.memory_space<vmem>>) attributes {dimension_semantics = [], scalar_prefetch = 0 : i64, scratch_operands = 0 : i64, tpu.core_type = #tpu.core_type<tc>} {
    %c0 = arith.constant 0 : index
    %c0_0 = arith.constant 0 : index
    %0 = vector.load %arg0[%c0, %c0_0] : memref<2x128xf32, #tpu.memory_space<vmem>>, vector<2x128xf32>
    %c0_1 = arith.constant 0 : index
    %c0_2 = arith.constant 0 : index
    %1 = vector.load %arg1[%c0_1, %c0_2] : memref<128x256xf32, #tpu.memory_space<vmem>>, vector<128x256xf32>
    %cst = arith.constant dense<0.000000e+00> : vector<2x256xf32>
    %2 = tpu.matmul %0, %1, %cst {dimension_numbers = #tpu.dot_dimension_numbers<[1], [0], [0], [1], [0, 0, 1, 1], [], []>} : vector<2x128xf32>, vector<128x256xf32>, vector<2x256xf32> -> vector<2x256xf32>
    %c0_3 = arith.constant 0 : index
    %c0_4 = arith.constant 0 : index
    %3 = vector.load %arg2[%c0_3, %c0_4] : memref<1x256xf32, #tpu.memory_space<vmem>>, vector<1x256xf32>
    %4 = vector.broadcast %3 : vector<1x256xf32> to vector<2x256xf32>
    %5 = arith.addf %2, %4 : vector<2x256xf32>
    %cst_5 = arith.constant 5.000000e-01 : f32
    %6 = vector.broadcast %cst_5 : f32 to vector<2x256xf32>
    %7 = arith.mulf %6, %5 : vector<2x256xf32>
    %cst_6 = arith.constant 0.707106769 : f32
    %8 = vector.broadcast %cst_6 : f32 to vector<2x256xf32>
    %9 = arith.addf %7, %8 : vector<2x256xf32>
    %c0_7 = arith.constant 0 : index
    %c0_8 = arith.constant 0 : index
    %10 = vector.load %arg3[%c0_7, %c0_8] : memref<2x256xf32, #tpu.memory_space<vmem>>, vector<2x256xf32>
    tpu.vector_store %arg3[%c0_7, %c0_8], %9 {strides = array<i32>} : memref<2x256xf32, #tpu.memory_space<vmem>>, vector<2x256xf32>,
    return
  }
}

</mosaic_0001>

<llo_original>
// kernel: tpu_custom_call.1
$region0: #{tpu_custom_call.1}
  #allocation0 [shape = 'u32[]', space=smem, size = 0x4, offset = 0x4, fixed_abs, tag = 'smem constant byte address 0x4 - core index']
  #allocation1 [shape = 'u32[72,128]{1,0:T(1,128)}', space=vmem, size = 0x9000, scoped, tag = 'internal scratch']
  %s0 = inlined_call_operand.hbm [shape: f32[2,128], index: 0, kind: input, shape index: {}]
  %s1 = inlined_call_operand.hbm [shape: f32[128,256], index: 1, kind: input, shape index: {}]
  %s2 = inlined_call_operand.hbm [shape: f32[1,256], index: 2, kind: input, shape index: {}]
  %s3 = inlined_call_operand.hbm [shape: f32[2,256], index: 3, kind: output, shape index: {}]
  %s4 = sld [smem:[#allocation0]]
  $region34: #{tpu_custom_call.1} parent=0
    _
  %s6 = ssub.s32 1, %s4
  %s7 = scalar_select 0, %s6, %s4
  $region1: #{tpu_custom_call.1} parent=0
    #allocation2 [shape = 'u8[1024]{0}', space=vmem, size = 0x400, scoped, tag = 'input window, operand 0, single buffered']
    #allocation3 [shape = 's32[1]{0}', space=sflag, size = 0x4, scoped, tag = 'scoped memory for tpu_custom_call.1']
    #allocation4 [shape = 's32[1]{0}', space=sflag, size = 0x4, scoped, tag = 'scoped memory for tpu_custom_call.1']
    #allocation5 [shape = 'u8[131072]{0}', space=vmem, size = 0x20000, scoped, tag = 'input window, operand 1, single buffered']
    #allocation6 [shape = 's32[1]{0}', space=sflag, size = 0x4, scoped, tag = 'scoped memory for tpu_custom_call.1']
    #allocation7 [shape = 'u8[1024]{0}', space=vmem, size = 0x400, scoped, tag = 'input window, operand 2, single buffered']
    #allocation8 [shape = 'u8[2048]{0}', space=vmem, size = 0x800, scoped, tag = 'output window, operand 0, single buffered']
    %8 = vsyncpa [#allocation3], 0
    %9 = vsyncpa [#allocation6], 0
    %10 = vsyncpa [#allocation4], 0
    // Predicated region
    $region2: #{tpu_custom_call.1} parent=1 // pred_check
      _
    $region3: #{tpu_custom_call.1} parent=1 // pred_check_branch
      %12 = sbr.rel (0) target = $region5
    $region4: #{tpu_custom_call.1} parent=1 // pred_region
      %14 = vsyncadd [#allocation3], 0
      %s16 = sshll.u32 %s0, 4
      %s17 = int_to_ptr.hbm [resolvable:$true] %s16
      %s18 = sshll.u32 [#allocation2], 4
      %s19 = int_to_ptr.vmem [resolvable:$true] %s18
      %21 = dma.hbm_to_vmem [thread:$0]  %s17, 32, %s19, [#allocation3]
    $region5: #{tpu_custom_call.1} parent=1 // pred_fallthru
      _
    // Predicated region
    $region6: #{tpu_custom_call.1} parent=1 // pred_check
      _
    $region7: #{tpu_custom_call.1} parent=1 // pred_check_branch
      %23 = sbr.rel (0) target = $region9
    $region8: #{tpu_custom_call.1} parent=1 // pred_region
      %25 = vsyncadd [#allocation6], 0
      %s26 = sshll.u32 %s1, 4
      %s27 = int_to_ptr.hbm [resolvable:$true] %s26
      %s28 = sshll.u32 [#allocation5], 4
      %s29 = int_to_ptr.vmem [resolvable:$true] %s28
      %34 = dma.hbm_to_vmem [thread:$0]  %s27, 4096, %s29, [#allocation6], 256, 256, 16
    $region9: #{tpu_custom_call.1} parent=1 // pred_fallthru
      _
    // Predicated region
    $region10: #{tpu_custom_call.1} parent=1 // pred_check
      _
    $region11: #{tpu_custom_call.1} parent=1 // pred_check_branch
      %36 = sbr.rel (0) target = $region13
    $region12: #{tpu_custom_call.1} parent=1 // pred_region
      %38 = vsyncadd [#allocation6], 0
      %s40 = sshll.u32 %s2, 4
      %s41 = int_to_ptr.hbm [resolvable:$true] %s40
      %s42 = sshll.u32 [#allocation7], 4
      %s43 = int_to_ptr.vmem [resolvable:$true] %s42
      %45 = dma.hbm_to_vmem [thread:$0]  %s41, 32, %s43, [#allocation6]
    $region13: #{tpu_custom_call.1} parent=1 // pred_fallthru
      _
    // Predicated region
    $region14: #{tpu_custom_call.1} parent=1 // pred_check
      _
    $region15: #{tpu_custom_call.1} parent=1 // pred_check_branch
      %47 = sbr.rel (0) target = $region17
    $region16: #{tpu_custom_call.1} parent=1 // pred_region
      %49 = dma.done [#allocation3], 32
    $region17: #{tpu_custom_call.1} parent=1 // pred_fallthru
      _
    // Predicated region
    $region18: #{tpu_custom_call.1} parent=1 // pred_check
      _
    $region19: #{tpu_custom_call.1} parent=1 // pred_check_branch
      %51 = sbr.rel (0) target = $region21
    $region20: #{tpu_custom_call.1} parent=1 // pred_region
      %53 = dma.done [#allocation6], 4096
    $region21: #{tpu_custom_call.1} parent=1 // pred_fallthru
      _
    // Predicated region
    $region22: #{tpu_custom_call.1} parent=1 // pred_check
      _
    $region23: #{tpu_custom_call.1} parent=1 // pred_check_branch
      %55 = sbr.rel (0) target = $region25
    $region24: #{tpu_custom_call.1} parent=1 // pred_region
      %57 = dma.done [#allocation6], 32
    $region25: #{tpu_custom_call.1} parent=1 // pred_fallthru
      _
    %v58 = vld [vmem:[#allocation2] sm:$0x3]
    %v59 = vld [vmem:[#allocation5] sm:$0xff]
    %v60 = vld [vmem:[#allocation5 + $0x8] sm:$0xff]
    %v61 = vld [vmem:[#allocation5 + $0x10] sm:$0xff]
    %v62 = vld [vmem:[#allocation5 + $0x18] sm:$0xff]
    %v63 = vld [vmem:[#allocation5 + $0x20] sm:$0xff]
    %v64 = vld [vmem:[#allocation5 + $0x28] sm:$0xff]
    %v65 = vld [vmem:[#allocation5 + $0x30] sm:$0xff]
    %v66 = vld [vmem:[#allocation5 + $0x38] sm:$0xff]
    %v67 = vld [vmem:[#allocation5 + $0x40] sm:$0xff]
    %v68 = vld [vmem:[#allocation5 + $0x48] sm:$0xff]
    %v69 = vld [vmem:[#allocation5 + $0x50] sm:$0xff]
    %v70 = vld [vmem:[#allocation5 + $0x58] sm:$0xff]
    %v71 = vld [vmem:[#allocation5 + $0x60] sm:$0xff]
    %v72 = vld [vmem:[#allocation5 + $0x68] sm:$0xff]
    %v73 = vld [vmem:[#allocation5 + $0x70] sm:$0xff]
    %v74 = vld [vmem:[#allocation5 + $0x78] sm:$0xff]
    %v75 = vld [vmem:[#allocation5 + $0x80] sm:$0xff]
    %v76 = vld [vmem:[#allocation5 + $0x88] sm:$0xff]
    %v77 = vld [vmem:[#allocation5 + $0x90] sm:$0xff]
    %v78 = vld [vmem:[#allocation5 + $0x98] sm:$0xff]
    %v79 = vld [vmem:[#allocation5 + $0xa0] sm:$0xff]
    %v80 = vld [vmem:[#allocation5 + $0xa8] sm:$0xff]
    %v81 = vld [vmem:[#allocation5 + $0xb0] sm:$0xff]
    %v82 = vld [vmem:[#allocation5 + $0xb8] sm:$0xff]
    %v83 = vld [vmem:[#allocation5 + $0xc0] sm:$0xff]
    %v84 = vld [vmem:[#allocation5 + $0xc8] sm:$0xff]
    %v85 = vld [vmem:[#allocation5 + $0xd0] sm:$0xff]
    %v86 = vld [vmem:[#allocation5 + $0xd8] sm:$0xff]
    %v87 = vld [vmem:[#allocation5 + $0xe0] sm:$0xff]
    %v88 = vld [vmem:[#allocation5 + $0xe8] sm:$0xff]
    %v89 = vld [vmem:[#allocation5 + $0xf0] sm:$0xff]
    %v90 = vld [vmem:[#allocation5 + $0xf8] sm:$0xff]
    %v91 = vld [vmem:[#allocation7] sm:$0x3]
    %v93 = vperm.slane %v91, 0
    %v94 = vperm.slane %v91, 1
    %97 = vmatpush.msra.mxu0 %v89
    %98 = vmatpush.msra.mxu0 %v87
    %99 = vmatpush.msra.mxu0 %v85
    %100 = vmatpush.msra.mxu0 %v83
    %101 = vmatpush.msra.mxu0 %v81
    %102 = vmatpush.msra.mxu0 %v79
    %103 = vmatpush.msra.mxu0 %v77
    %104 = vmatpush.msra.mxu0 %v75
    %105 = vmatpush.msra.mxu0 %v73
    %106 = vmatpush.msra.mxu0 %v71
    %107 = vmatpush.msra.mxu0 %v69
    %108 = vmatpush.msra.mxu0 %v67
    %109 = vmatpush.msra.mxu0 %v65
    %110 = vmatpush.msra.mxu0 %v63
    %111 = vmatpush.msra.mxu0 %v61
    %112 = vmatpush.msra.mxu0 %v59
    %113 = vmatmul.f32.gmra.mxu0 %v58
    %v114 = vpop.f32.mrf.mxu0
    %v115 = vadd.f32 %v93, %v114
    %116 = vdwg.mxu0
    %117 = vmatpush.msra.mxu0 %v90
    %118 = vmatpush.msra.mxu0 %v88
    %119 = vmatpush.msra.mxu0 %v86
    %120 = vmatpush.msra.mxu0 %v84
    %121 = vmatpush.msra.mxu0 %v82
    %122 = vmatpush.msra.mxu0 %v80
    %123 = vmatpush.msra.mxu0 %v78
    %124 = vmatpush.msra.mxu0 %v76
    %125 = vmatpush.msra.mxu0 %v74
    %126 = vmatpush.msra.mxu0 %v72
    %127 = vmatpush.msra.mxu0 %v70
    %128 = vmatpush.msra.mxu0 %v68
    %129 = vmatpush.msra.mxu0 %v66
    %130 = vmatpush.msra.mxu0 %v64
    %131 = vmatpush.msra.mxu0 %v62
    %132 = vmatpush.msra.mxu0 %v60
    %133 = vmatmul.f32.gmra.mxu0 %v58
    %v134 = vpop.f32.mrf.mxu0
    %v135 = vadd.f32 %v94, %v134
    %136 = vdwg.mxu0
    %v137 = vmul.f32 %v115, 0.5
    %v138 = vmul.f32 %v135, 0.5
    %v139 = vadd.f32 %v137, 0.70710677
    %v140 = vadd.f32 %v138, 0.70710677
    %v143 = vrot.slane %v140, 6
    %vm144 = vcmask 1041408
    %v145 = vsel %vm144, %v139, %v143
    %147 = vst [vmem:[#allocation8] sm:$0xf] %v145
    // Predicated region
    $region26: #{tpu_custom_call.1} parent=1 // pred_check
      _
    $region27: #{tpu_custom_call.1} parent=1 // pred_check_branch
      %149 = sbr.rel (0) target = $region29
    $region28: #{tpu_custom_call.1} parent=1 // pred_region
      %151 = vsyncadd [#allocation4], 0
      %s153 = sshll.u32 [#allocation8], 4
      %s154 = int_to_ptr.vmem [resolvable:$true] %s153
      %s155 = sshll.u32 %s3, 4
      %s156 = int_to_ptr.hbm [resolvable:$true] %s155
      %158 = dma.vmem_to_hbm [thread:$0]  %s154, 64, %s156, [#allocation4]
    $region29: #{tpu_custom_call.1} parent=1 // pred_fallthru
      _
    // Predicated region
    $region30: #{tpu_custom_call.1} parent=1 // pred_check
      _
    $region31: #{tpu_custom_call.1} parent=1 // pred_check_branch
      %160 = sbr.rel (0) target = $region33
    $region32: #{tpu_custom_call.1} parent=1 // pred_region
      %162 = dma.done [#allocation4], 64
    $region33: #{tpu_custom_call.1} parent=1 // pred_fallthru
      _
    %163 = vsyncpa [#allocation3], 1
    %164 = vsyncpa [#allocation6], 1
    %165 = vsyncpa [#allocation4], 1

</llo_original>
